<compile_context>
chip_gen: v7x
topology: tpu7x:2x2x1
jax: 0.10.0
libtpu: 0.0.40
codegen_flags: <defaults>
</compile_context>

<pallas_src>
import functools

import jax
import jax.numpy as jnp
from jax import lax
from jax.experimental import pallas as pl
from jax.experimental.pallas import tpu as pltpu
import numpy as np

_MASK_SCALE = -1000000000.0


# --------------------------------------------------------------------------
# Kernel
# --------------------------------------------------------------------------
def _make_wce_kernel(use_mask: bool, compute_neg: bool):
    """Build a branch-specialized kernel.

    Ref layout (inputs then outputs):
      logits_ref (tb, C)                   native dtype (f32/bf16), cast in-kernel
      [sw_ref    (tb, C)]  if use_mask     0/1 mask, any dtype (int8 preferred)
      tgt_ref    (tb, 1)   int32
      ce_ref     (1, 128)  f32             per-tile sum of -log_softmax[target]
      [neg_ref   (1, 128)] if compute_neg  per-tile sum of fine_tune_score_neg
    """

    def kernel(*refs):
        refs = list(refs)
        logits_ref = refs.pop(0)
        sw_ref = refs.pop(0) if use_mask else None
        tgt_ref = refs.pop(0)
        ce_ref = refs.pop(0)
        neg_ref = refs.pop(0) if compute_neg else None

        logits = logits_ref[...].astype(jnp.float32)
        if use_mask:
            masked = _MASK_SCALE * sw_ref[...].astype(jnp.float32) + logits
        else:
            masked = logits
        tgt = tgt_ref[...]                                    # (tb, 1) int32

        # log-softmax over the class (lane) dimension.
        m = jnp.max(masked, axis=1, keepdims=True)            # (tb, 1)
        z = masked - m
        lse = jnp.log(jnp.sum(jnp.exp(z), axis=1, keepdims=True))

        # Gather z at the target class via lane-iota compare (no gather op on TPU).
        iota = lax.broadcasted_iota(jnp.int32, masked.shape, 1)
        onehot = iota == tgt                                   # (tb, C)
        tgt_z = jnp.sum(jnp.where(onehot, z, 0.0), axis=1, keepdims=True)

        ce_rows = lse - tgt_z                                  # = -log_softmax[target]
        ce_sum = jnp.sum(ce_rows, axis=0, keepdims=True)       # (1, 1)
        ce_ref[...] = jnp.broadcast_to(ce_sum, ce_ref.shape)   # lane-dense store

        if compute_neg:
            tar = tgt_z + m                                    # = masked[target], reuses gather
            # masked_softmax(relu(-tar + masked + 1), dim=1)
            A = jnp.maximum(masked - tar + 1.0, 0.0)
            A_max = jnp.max(A, axis=1, keepdims=True)
            A_exp = jnp.exp(A - A_max) * (A != 0.0).astype(jnp.float32)
            S = jnp.sum(A_exp, axis=1, keepdims=True)
            S = S + (S == 0.0).astype(jnp.float32)
            # Per-row exact reciprocal + broadcast multiply (cheaper than a
            # per-element divide).  pl.reciprocal(approx=True) would ride the
            # EUP but may exceed the 1e-5 validation tolerance, so keep exact.
            score = A_exp * (1.0 / S)
            # log(sigmoid(x)) = min(x, 0) - log(1 + exp(-|x|))
            # (log1p would be marginally more accurate; abs error < 1e-7 here
            #  and jnp.log(1 + .) is a validated Mosaic lowering.)
            x = -masked - tar - 2.0
            logsig = jnp.minimum(x, 0.0) - jnp.log(1.0 + jnp.exp(-jnp.abs(x)))
            neg_rows = jnp.sum(score * logsig, axis=1, keepdims=True)
            neg_sum = jnp.sum(neg_rows, axis=0, keepdims=True)  # (1, 1)
            neg_ref[...] = jnp.broadcast_to(neg_sum, neg_ref.shape)

    return kernel


# --------------------------------------------------------------------------
# Tiling / wrapper
# --------------------------------------------------------------------------
def _choose_tb(B, C, use_mask, compute_neg):
    """Pick the batch tile: big enough for DMA efficiency, small enough for VMEM.

    Budget is conservative for v7x's 64 MiB physical VMEM (and well within the
    128 MiB of v5e/v6e); accounts for double-buffered inputs plus an estimate of
    live f32 (tb, C) temporaries inside the kernel.
    """
    live_f32 = 10 if compute_neg else 5
    per_row = C * (4 * 2 + (1 * 2 if use_mask else 0) + 4 * live_f32)
    per_row += 2 * 128 * 4            # padded (tb, 1) int32 target block, 2 buffers
    budget = 24 << 20
    cap = max(8, budget // per_row)
    if B >= 16:
        cap = min(cap, B // 2)        # keep >=2 grid steps so both v7x TCs get work
    cap = min(cap, B)
    for tb in range(cap, 0, -1):
        # (tb, C) blocks: second-minor must be a multiple of the sublane tile
        # (32 covers int8/bf16/f32) or equal the full batch dim.
        if B % tb == 0 and (tb % 32 == 0 or tb == B):
            return tb
    return B


def _wce_totals(outputs, target, sample_weight, compute_neg):
    """Run the Pallas kernel; return batch totals (ce_sum,) or (ce_sum, neg_sum)."""
    B, C = outputs.shape
    use_mask = sample_weight is not None
    tb = _choose_tb(B, C, use_mask, compute_neg)
    assert B % tb == 0
    nt = B // tb

    tgt2d = target.reshape(B, 1).astype(jnp.int32)

    args = [outputs]
    in_specs = [pl.BlockSpec((tb, C), lambda i: (i, 0))]
    if use_mask:
        args.append(sample_weight)                       # native dtype (int8 preferred)
        in_specs.append(pl.BlockSpec((tb, C), lambda i: (i, 0)))
    args.append(tgt2d)
    in_specs.append(pl.BlockSpec((tb, 1), lambda i: (i, 0)))

    n_out = 2 if compute_neg else 1
    out_shape = tuple(jax.ShapeDtypeStruct((nt, 1, 128), jnp.float32)
                      for _ in range(n_out))
    out_specs = [pl.BlockSpec((None, 1, 128), lambda i: (i, 0, 0))
                 for _ in range(n_out)]

    outs = pl.pallas_call(
        _make_wce_kernel(use_mask, compute_neg),
        out_shape=out_shape,
        grid_spec=pltpu.PrefetchScalarGridSpec(
            num_scalar_prefetch=0,
            grid=(nt,),
            in_specs=in_specs,
            out_specs=out_specs,
        ),
        compiler_params=pltpu.CompilerParams(
            dimension_semantics=("parallel",),
            vmem_limit_bytes=48 * 1024 * 1024,   # within v7x's 64 MiB physical VMEM
        ),
    )(*args)
    if not isinstance(outs, (tuple, list)):
        outs = (outs,)
    # Tiny final reduction over per-tile partial sums (nt elements each).
    return tuple(jnp.sum(o[:, 0, 0]) for o in outs)


@functools.partial(jax.jit, static_argnames=("compute_neg",))
def _weighted_loss(outputs, sample_weight, target, compute_neg):
    B = outputs.shape[0]
    totals = _wce_totals(outputs, target, sample_weight, compute_neg)
    result_loss = jnp.reshape(totals[0] / B, (1,))     # matches torch .mean(dim=0)
    if compute_neg:
        result_loss = result_loss - totals[1] / B      # += -fine_tune_score_neg.mean()
    return result_loss


@jax.jit
def _unmasked_pre_loss(outputs, target):
    B = outputs.shape[0]
    totals = _wce_totals(outputs, target, None, False)
    return jnp.reshape(totals[0] / B, (1,))


def weight_cro_loss(outputs, target, sample_weight=None, Type="pre",
                    model_type=None):
    """JAX/Pallas equivalent of WeightCroLoss.forward (implemented branches)."""
    if sample_weight is not None:
        # 'pre' -> masked CE only; otherwise masked CE + fine-tune neg term,
        # both fully fused inside the kernel.
        return _weighted_loss(outputs, sample_weight, target,
                              compute_neg=(Type != "pre"))
    elif Type == "pre":
        if model_type == "TeRo":
            # TODO(synk): TeRo branch (110 - scores, view(49,-1), softplus) not implemented.
            raise NotImplementedError("TeRo branch not implemented")
        return _unmasked_pre_loss(outputs, target)
    else:
        # TODO(synk): unweighted model_type-specific fine-tune branches (TNT/HyTE/DE/TA/
        # Timeplex/TeRo) use per-model score shaping not covered by this kernel.
        raise NotImplementedError(
            "unweighted non-'pre' model_type branches not implemented")


# --------------------------------------------------------------------------
# Pure-JAX references (mirror the PyTorch forward)
# --------------------------------------------------------------------------
def _reference_weighted(outputs, target, sample_weight, Type):
    outputs = outputs.astype(jnp.float32)
    sw = sample_weight.astype(jnp.float32)
    masked = _MASK_SCALE * sw + outputs
    logsm = jax.nn.log_softmax(masked, axis=1)
    tgt = target.reshape(-1, 1)
    log = jnp.take_along_axis(logsm, tgt, axis=1)
    result_loss = (-log).mean(axis=0)
    if Type == "pre":
        return result_loss
    tar = jnp.take_along_axis(masked, tgt, axis=1)
    A = jax.nn.relu(-tar + masked + 1.0)
    A_max = jnp.max(A, axis=1, keepdims=True)
    A_exp = jnp.exp(A - A_max) * (A != 0.0).astype(jnp.float32)
    S = jnp.sum(A_exp, axis=1, keepdims=True)
    S = S + (S == 0.0).astype(jnp.float32)
    score = A_exp / S
    neg = jnp.sum(score * jax.nn.log_sigmoid(-masked - tar - 2.0), axis=1)
    return result_loss + (-neg.mean())


def _reference_unmasked_pre(outputs, target):
    logsm = jax.nn.log_softmax(outputs.astype(jnp.float32), axis=1)
    log = jnp.take_along_axis(logsm, target.reshape(-1, 1), axis=1)
    return (-log).mean(axis=0)


# --------------------------------------------------------------------------
# Demo / validation
# --------------------------------------------------------------------------
if __name__ == "__main__":
    B, C = 64, 256          # small, but multi-tile (tb=32 -> 2 parallel grid steps)
    key = jax.random.PRNGKey(0)
    k1, k2, k3 = jax.random.split(key, 3)

    outputs = jax.random.normal(k1, (B, C), dtype=jnp.float32)
    target = jax.random.randint(k2, (B,), 0, C, dtype=jnp.int32)
    # 0/1 mask kept as int8 to cut HBM read traffic; target positions never masked.
    sw_bits = jax.random.bernoulli(k3, 0.3, (B, C))
    tgt_onehot = jax.nn.one_hot(target, C, dtype=jnp.float32) > 0.5
    sw_i8 = jnp.where(tgt_onehot, 0, sw_bits).astype(jnp.int8)
    sw_f32 = sw_i8.astype(jnp.float32)

    # Richest implemented branch: sample_weight given, Type != 'pre' (CE + neg term).
    loss_train = jax.block_until_ready(
        weight_cro_loss(outputs, target, sample_weight=sw_i8, Type="train",
                        model_type=None))
    ref_train = _reference_weighted(outputs, target, sw_f32, "train")
    np.testing.assert_allclose(np.asarray(loss_train), np.asarray(ref_train),
                               rtol=1e-5, atol=1e-5)

    # Weighted 'pre' branch (neg term skipped inside the specialized kernel).
    loss_pre = jax.block_until_ready(
        weight_cro_loss(outputs, target, sample_weight=sw_i8, Type="pre"))
    ref_pre = _reference_weighted(outputs, target, sw_f32, "pre")
    np.testing.assert_allclose(np.asarray(loss_pre), np.asarray(ref_pre),
                               rtol=1e-5, atol=1e-5)

    # Unweighted 'pre' branch (no mask streamed through HBM at all).
    loss_upre = jax.block_until_ready(
        weight_cro_loss(outputs, target, sample_weight=None, Type="pre"))
    ref_upre = _reference_unmasked_pre(outputs, target)
    np.testing.assert_allclose(np.asarray(loss_upre), np.asarray(ref_upre),
                               rtol=1e-5, atol=1e-5)

    print("KERNEL_OK")
</pallas_src>

<mosaic_0001>
module attributes {stable_mosaic.version = 11 : i64} {
  func.func @kernel(%arg0: i32, %arg1: memref<32x256xf32, #tpu.memory_space<vmem>>, %arg2: memref<32x256xi8, #tpu.memory_space<vmem>>, %arg3: memref<32x1xi32, #tpu.memory_space<vmem>>, %arg4: memref<1x1x128xf32, #tpu.memory_space<vmem>>, %arg5: memref<1x1x128xf32, #tpu.memory_space<vmem>>) attributes {dimension_semantics = [#tpu.dimension_semantics<parallel>], iteration_bounds = array<i64: 2>, scalar_prefetch = 0 : i64, scratch_operands = 0 : i64, tpu.core_type = #tpu.core_type<tc>, window_params = [{transform_indices = @transform_0, window_bounds = array<i64: 32, 256>}, {transform_indices = @transform_1, window_bounds = array<i64: 32, 256>}, {transform_indices = @transform_2, window_bounds = array<i64: 32, 1>}, {transform_indices = @transform_3, window_bounds = array<i64: 1, 1, 128>}, {transform_indices = @transform_4, window_bounds = array<i64: 1, 1, 128>}]} {
    %c0 = arith.constant 0 : index
    %c0_0 = arith.constant 0 : index
    %0 = vector.load %arg1[%c0, %c0_0] : memref<32x256xf32, #tpu.memory_space<vmem>>, vector<32x256xf32>
    %c0_1 = arith.constant 0 : index
    %c0_2 = arith.constant 0 : index
    %1 = vector.load %arg2[%c0_1, %c0_2] : memref<32x256xi8, #tpu.memory_space<vmem>>, vector<32x256xi8>
    %2 = arith.sitofp %1 : vector<32x256xi8> to vector<32x256xf32>
    %cst = arith.constant -1.000000e+09 : f32
    %3 = vector.broadcast %cst : f32 to vector<32x256xf32>
    %4 = arith.mulf %3, %2 : vector<32x256xf32>
    %5 = arith.addf %4, %0 : vector<32x256xf32>
    %c0_3 = arith.constant 0 : index
    %c0_4 = arith.constant 0 : index
    %6 = vector.load %arg3[%c0_3, %c0_4] : memref<32x1xi32, #tpu.memory_space<vmem>>, vector<32x1xi32>
    %cst_5 = arith.constant dense<0xFF800000> : vector<32xf32>
    %7 = vector.multi_reduction <maximumf>, %5, %cst_5 [1] : vector<32x256xf32> to vector<32xf32>
    %8 = vector.shape_cast %7 : vector<32xf32> to vector<32x1xf32>
    %9 = vector.broadcast %8 : vector<32x1xf32> to vector<32x256xf32>
    %10 = arith.subf %5, %9 : vector<32x256xf32>
    %11 = math.exp %10 : vector<32x256xf32>
    %cst_6 = arith.constant dense<0.000000e+00> : vector<32xf32>
    %12 = vector.multi_reduction <add>, %11, %cst_6 [1] : vector<32x256xf32> to vector<32xf32>
    %13 = vector.shape_cast %12 : vector<32xf32> to vector<32x1xf32>
    %14 = math.log %13 : vector<32x1xf32>
    %15 = tpu.iota {dimensions = array<i32: 1>} : vector<32x256xi32>
    %16 = vector.broadcast %6 : vector<32x1xi32> to vector<32x256xi32>
    %17 = arith.cmpi eq, %15, %16 : vector<32x256xi32>
    %cst_7 = arith.constant 0.000000e+00 : f32
    %18 = vector.broadcast %cst_7 : f32 to vector<32x256xf32>
    %19 = arith.select %17, %10, %18 : vector<32x256xi1>, vector<32x256xf32>
    %cst_8 = arith.constant dense<0.000000e+00> : vector<32xf32>
    %20 = vector.multi_reduction <add>, %19, %cst_8 [1] : vector<32x256xf32> to vector<32xf32>
    %21 = vector.shape_cast %20 : vector<32xf32> to vector<32x1xf32>
    %22 = arith.subf %14, %21 : vector<32x1xf32>
    %cst_9 = arith.constant dense<0.000000e+00> : vector<1xf32>
    %23 = vector.multi_reduction <add>, %22, %cst_9 [0] : vector<32x1xf32> to vector<1xf32>
    %24 = vector.shape_cast %23 : vector<1xf32> to vector<1x1xf32>
    %25 = vector.shape_cast %24 : vector<1x1xf32> to vector<1x1xf32>
    %26 = vector.broadcast %25 : vector<1x1xf32> to vector<1x128xf32>
    %c0_10 = arith.constant 0 : index
    %c0_11 = arith.constant 0 : index
    %c0_12 = arith.constant 0 : index
    %27 = vector.load %arg4[%c0_10, %c0_11, %c0_12] : memref<1x1x128xf32, #tpu.memory_space<vmem>>, vector<1x1x128xf32>
    %28 = vector.shape_cast %27 : vector<1x1x128xf32> to vector<1x128xf32>
    %29 = vector.shape_cast %26 : vector<1x128xf32> to vector<1x1x128xf32>
    tpu.vector_store %arg4[%c0_10, %c0_11, %c0_12], %29 {strides = array<i32>} : memref<1x1x128xf32, #tpu.memory_space<vmem>>, vector<1x1x128xf32>,
    %30 = arith.addf %21, %8 : vector<32x1xf32>
    %31 = vector.broadcast %30 : vector<32x1xf32> to vector<32x256xf32>
    %32 = arith.subf %5, %31 : vector<32x256xf32>
    %cst_13 = arith.constant 1.000000e+00 : f32
    %33 = vector.broadcast %cst_13 : f32 to vector<32x256xf32>
    %34 = arith.addf %32, %33 : vector<32x256xf32>
    %cst_14 = arith.constant 0.000000e+00 : f32
    %35 = vector.broadcast %cst_14 : f32 to vector<32x256xf32>
    %36 = arith.maximumf %34, %35 : vector<32x256xf32>
    %cst_15 = arith.constant dense<0xFF800000> : vector<32xf32>
    %37 = vector.multi_reduction <maximumf>, %36, %cst_15 [1] : vector<32x256xf32> to vector<32xf32>
    %38 = vector.shape_cast %37 : vector<32xf32> to vector<32x1xf32>
    %39 = vector.broadcast %38 : vector<32x1xf32> to vector<32x256xf32>
    %40 = arith.subf %36, %39 : vector<32x256xf32>
    %41 = math.exp %40 : vector<32x256xf32>
    %cst_16 = arith.constant 0.000000e+00 : f32
    %42 = vector.broadcast %cst_16 : f32 to vector<32x256xf32>
    %43 = arith.cmpf one, %36, %42 : vector<32x256xf32>
    %44 = arith.extui %43 : vector<32x256xi1> to vector<32x256xi32>
    %45 = arith.sitofp %44 : vector<32x256xi32> to vector<32x256xf32>
    %46 = arith.mulf %41, %45 : vector<32x256xf32>
    %cst_17 = arith.constant dense<0.000000e+00> : vector<32xf32>
    %47 = vector.multi_reduction <add>, %46, %cst_17 [1] : vector<32x256xf32> to vector<32xf32>
    %48 = vector.shape_cast %47 : vector<32xf32> to vector<32x1xf32>
    %cst_18 = arith.constant 0.000000e+00 : f32
    %49 = vector.broadcast %cst_18 : f32 to vector<32x1xf32>
    %50 = arith.cmpf oeq, %48, %49 : vector<32x1xf32>
    %51 = arith.extui %50 : vector<32x1xi1> to vector<32x1xi32>
    %52 = arith.sitofp %51 : vector<32x1xi32> to vector<32x1xf32>
    %53 = arith.addf %48, %52 : vector<32x1xf32>
    %cst_19 = arith.constant 1.000000e+00 : f32
    %54 = vector.broadcast %cst_19 : f32 to vector<32x1xf32>
    %55 = arith.divf %54, %53 : vector<32x1xf32>
    %56 = vector.broadcast %55 : vector<32x1xf32> to vector<32x256xf32>
    %57 = arith.mulf %46, %56 : vector<32x256xf32>
    %cst_20 = arith.constant 0.000000e+00 : f32
    %58 = vector.broadcast %cst_20 : f32 to vector<32x256xf32>
    %59 = arith.subf %58, %5 : vector<32x256xf32>
    %60 = vector.broadcast %30 : vector<32x1xf32> to vector<32x256xf32>
    %61 = arith.subf %59, %60 : vector<32x256xf32>
    %cst_21 = arith.constant 2.000000e+00 : f32
    %62 = vector.broadcast %cst_21 : f32 to vector<32x256xf32>
    %63 = arith.subf %61, %62 : vector<32x256xf32>
    %cst_22 = arith.constant 0.000000e+00 : f32
    %64 = vector.broadcast %cst_22 : f32 to vector<32x256xf32>
    %65 = arith.minimumf %63, %64 : vector<32x256xf32>
    %66 = math.absf %63 : vector<32x256xf32>
    %cst_23 = arith.constant 0.000000e+00 : f32
    %67 = vector.broadcast %cst_23 : f32 to vector<32x256xf32>
    %68 = arith.subf %67, %66 : vector<32x256xf32>
    %69 = math.exp %68 : vector<32x256xf32>
    %cst_24 = arith.constant 1.000000e+00 : f32
    %70 = vector.broadcast %cst_24 : f32 to vector<32x256xf32>
    %71 = arith.addf %70, %69 : vector<32x256xf32>
    %72 = math.log %71 : vector<32x256xf32>
    %73 = arith.subf %65, %72 : vector<32x256xf32>
    %74 = arith.mulf %57, %73 : vector<32x256xf32>
    %cst_25 = arith.constant dense<0.000000e+00> : vector<32xf32>
    %75 = vector.multi_reduction <add>, %74, %cst_25 [1] : vector<32x256xf32> to vector<32xf32>
    %76 = vector.shape_cast %75 : vector<32xf32> to vector<32x1xf32>
    %cst_26 = arith.constant dense<0.000000e+00> : vector<1xf32>
    %77 = vector.multi_reduction <add>, %76, %cst_26 [0] : vector<32x1xf32> to vector<1xf32>
    %78 = vector.shape_cast %77 : vector<1xf32> to vector<1x1xf32>
    %79 = vector.shape_cast %78 : vector<1x1xf32> to vector<1x1xf32>
    %80 = vector.broadcast %79 : vector<1x1xf32> to vector<1x128xf32>
    %c0_27 = arith.constant 0 : index
    %c0_28 = arith.constant 0 : index
    %c0_29 = arith.constant 0 : index
    %81 = vector.load %arg5[%c0_27, %c0_28, %c0_29] : memref<1x1x128xf32, #tpu.memory_space<vmem>>, vector<1x1x128xf32>
    %82 = vector.shape_cast %81 : vector<1x1x128xf32> to vector<1x128xf32>
    %83 = vector.shape_cast %80 : vector<1x128xf32> to vector<1x1x128xf32>
    tpu.vector_store %arg5[%c0_27, %c0_28, %c0_29], %83 {strides = array<i32>} : memref<1x1x128xf32, #tpu.memory_space<vmem>>, vector<1x1x128xf32>,
    return
  }
  func.func @transform_0(%arg0: i32) -> (i32, i32) {
    %c0_i32 = arith.constant 0 : i32
    %c0_i32_0 = arith.constant 0 : i32
    return %arg0, %c0_i32 : i32, i32
  }
  func.func @transform_1(%arg0: i32) -> (i32, i32) {
    %c0_i32 = arith.constant 0 : i32
    %c0_i32_0 = arith.constant 0 : i32
    return %arg0, %c0_i32 : i32, i32
  }
  func.func @transform_2(%arg0: i32) -> (i32, i32) {
    %c0_i32 = arith.constant 0 : i32
    %c0_i32_0 = arith.constant 0 : i32
    return %arg0, %c0_i32 : i32, i32
  }
  func.func @transform_3(%arg0: i32) -> (i32, i32, i32) {
    %c0_i32 = arith.constant 0 : i32
    %c0_i32_0 = arith.constant 0 : i32
    %c0_i32_1 = arith.constant 0 : i32
    return %arg0, %c0_i32, %c0_i32_0 : i32, i32, i32
  }
  func.func @transform_4(%arg0: i32) -> (i32, i32, i32) {
    %c0_i32 = arith.constant 0 : i32
    %c0_i32_0 = arith.constant 0 : i32
    %c0_i32_1 = arith.constant 0 : i32
    return %arg0, %c0_i32, %c0_i32_0 : i32, i32, i32
  }
}

</mosaic_0001>

<llo_original>
// kernel: _weighted_loss.1
$region0: #{_weighted_loss.1}
  #allocation0 [shape = 'u32[]', space=smem, size = 0x4, offset = 0x4, fixed_abs, tag = 'smem constant byte address 0x4 - core index']
  #allocation1 [shape = 'u32[144,128]{1,0:T(1,128)}', space=vmem, size = 0x12000, scoped, tag = 'internal scratch']
  %s0 = inlined_call_operand.hbm [shape: f32[64,256], index: 0, kind: input, shape index: {}]
  %s1 = inlined_call_operand.vmem [shape: s8[64,256], index: 1, kind: input, shape index: {}]
  %s2 = inlined_call_operand.vmem [shape: s32[64,1], index: 2, kind: input, shape index: {}]
  %s3 = inlined_call_operand.vmem [shape: f32[2,1,128], index: 3, kind: output, shape index: {0}]
  %s4 = inlined_call_operand.vmem [shape: f32[2,1,128], index: 4, kind: output, shape index: {1}]
  %5 = xla_tuple %s3, %s4
  %s6 = sld [smem:[#allocation0]]
  $region57: #{_weighted_loss.1} parent=0
    _
  %s8 = ssub.s32 1, %s6
  %s9 = scalar_select 0, %s8, %s6
  $region1: #{_weighted_loss.1} parent=0
    #allocation2 [shape = 'u8[65536]{0}', space=vmem, size = 0x10000, scoped, tag = 'input window, operand 0']
    #allocation3 [shape = 's32[2]{0}', space=sflag, size = 0x8, scoped, tag = 'scoped memory for _weighted_loss.1']
    %10 = vsyncpa [#allocation3], 0
    %s11 = scalar_lea.sflag [#allocation3], 1
    %12 = vsyncpa %s11, 0
    loop: start=0, step=1, limit=4
    $region2: #{_weighted_loss.1} parent=1 // loop_pre_header
      _
    $region3: #{_weighted_loss.1} parent=1 // loop_header
      %s14 = sphi 0, %s18
      %p15 = scmp.ge.s32.totalorder %s14, 4
      %s24 = sphi 0, %s26
      %s27 = sphi 0, %s24
      %s28 = sphi 0, %s27
      %s44 = sphi 0, %s28
      %s50 = sphi 0, %s52
      %s53 = sphi 0, %s50
      %s54 = sphi 0, %s53
      %s70 = sphi 0, %s54
      %s76 = sphi 0, %s78
      %s79 = sphi 0, %s76
      %s80 = sphi 0, %s79
      %s96 = sphi 0, %s80
      %s102 = sphi 0, %s104
      %s105 = sphi 0, %s102
      %s106 = sphi 0, %s105
      %s122 = sphi 0, %s106
      %s128 = sphi 0, %s130
      %s131 = sphi 0, %s128
      %s132 = sphi 0, %s131
      %s148 = sphi 0, %s132
    $region4: #{_weighted_loss.1} parent=1 // loop_header_branch
      %17 = sbr.rel (%p15) target = $region8
    $region5: #{_weighted_loss.1} parent=1 // loop_body
      %s19 = ssub.s32 %s14, 1
      %s20 = ssub.s32 %s14, 2
      %s21 = sadd.s32 %s14, 1
      %s22 = ssub.s32 %s14, %s21
      %p23 = scmp.eq.s32.totalorder %s22, 0
      %s25 = sadd.s32 %s24, 1
      %s26 = scalar_select %p23, %s24, %s25
      %p29 = pneg %p23
      %p30 = scmp.eq.s32.totalorder %s14, 1
      %p31 = por %p29, %p30
      %p32 = scmp.ne.s32.totalorder %s24, %s27
      %p33 = scmp.eq.s32.totalorder %s14, 0
      %p34 = por %p32, %p33
      %p35 = scmp.ne.s32.totalorder %s24, %s27
      %p36 = scmp.eq.s32.totalorder %s19, 1
      %p37 = por %p35, %p36
      %p38 = scmp.ne.s32.totalorder %s27, %s28
      %p39 = scmp.eq.s32.totalorder %s19, 0
      %p40 = por %p38, %p39
      %p41 = scmp.ne.s32.totalorder %s27, %s28
      %p42 = scmp.eq.s32.totalorder %s20, 1
      %p43 = por %p41, %p42
      %p45 = scmp.ne.s32.totalorder %s28, %s44
      %p46 = scmp.eq.s32.totalorder %s20, 0
      %p47 = por %p45, %p46
      %s48 = ssub.s32 %s14, %s21
      %p49 = scmp.eq.s32.totalorder %s48, 0
      %s51 = sadd.s32 %s50, 1
      %s52 = scalar_select %p49, %s50, %s51
      %p55 = pneg %p49
      %p56 = scmp.eq.s32.totalorder %s14, 1
      %p57 = por %p55, %p56
      %p58 = scmp.ne.s32.totalorder %s50, %s53
      %p59 = scmp.eq.s32.totalorder %s14, 0
      %p60 = por %p58, %p59
      %p61 = scmp.ne.s32.totalorder %s50, %s53
      %p62 = scmp.eq.s32.totalorder %s19, 1
      %p63 = por %p61, %p62
      %p64 = scmp.ne.s32.totalorder %s53, %s54
      %p65 = scmp.eq.s32.totalorder %s19, 0
      %p66 = por %p64, %p65
      %p67 = scmp.ne.s32.totalorder %s53, %s54
      %p68 = scmp.eq.s32.totalorder %s20, 1
      %p69 = por %p67, %p68
      %p71 = scmp.ne.s32.totalorder %s54, %s70
      %p72 = scmp.eq.s32.totalorder %s20, 0
      %p73 = por %p71, %p72
      %s74 = ssub.s32 %s14, %s21
      %p75 = scmp.eq.s32.totalorder %s74, 0
      %s77 = sadd.s32 %s76, 1
      %s78 = scalar_select %p75, %s76, %s77
      %p81 = pneg %p75
      %p82 = scmp.eq.s32.totalorder %s14, 1
      %p83 = por %p81, %p82
      %p84 = scmp.ne.s32.totalorder %s76, %s79
      %p85 = scmp.eq.s32.totalorder %s14, 0
      %p86 = por %p84, %p85
      %p87 = scmp.ne.s32.totalorder %s76, %s79
      %p88 = scmp.eq.s32.totalorder %s19, 1
      %p89 = por %p87, %p88
      %p90 = scmp.ne.s32.totalorder %s79, %s80
      %p91 = scmp.eq.s32.totalorder %s19, 0
      %p92 = por %p90, %p91
      %p93 = scmp.ne.s32.totalorder %s79, %s80
      %p94 = scmp.eq.s32.totalorder %s20, 1
      %p95 = por %p93, %p94
      %p97 = scmp.ne.s32.totalorder %s80, %s96
      %p98 = scmp.eq.s32.totalorder %s20, 0
      %p99 = por %p97, %p98
      %s100 = ssub.s32 %s14, %s21
      %p101 = scmp.eq.s32.totalorder %s100, 0
      %s103 = sadd.s32 %s102, 1
      %s104 = scalar_select %p101, %s102, %s103
      %p107 = pneg %p101
      %p108 = scmp.eq.s32.totalorder %s14, 1
      %p109 = por %p107, %p108
      %p110 = scmp.ne.s32.totalorder %s102, %s105
      %p111 = scmp.eq.s32.totalorder %s14, 0
      %p112 = por %p110, %p111
      %p113 = scmp.ne.s32.totalorder %s102, %s105
      %p114 = scmp.eq.s32.totalorder %s19, 1
      %p115 = por %p113, %p114
      %p116 = scmp.ne.s32.totalorder %s105, %s106
      %p117 = scmp.eq.s32.totalorder %s19, 0
      %p118 = por %p116, %p117
      %p119 = scmp.ne.s32.totalorder %s105, %s106
      %p120 = scmp.eq.s32.totalorder %s20, 1
      %p121 = por %p119, %p120
      %p123 = scmp.ne.s32.totalorder %s106, %s122
      %p124 = scmp.eq.s32.totalorder %s20, 0
      %p125 = por %p123, %p124
      %s126 = ssub.s32 %s14, %s21
      %p127 = scmp.eq.s32.totalorder %s126, 0
      %s129 = sadd.s32 %s128, 1
      %s130 = scalar_select %p127, %s128, %s129
      %p133 = pneg %p127
      %p134 = scmp.eq.s32.totalorder %s14, 1
      %p135 = por %p133, %p134
      %p136 = scmp.ne.s32.totalorder %s128, %s131
      %p137 = scmp.eq.s32.totalorder %s14, 0
      %p138 = por %p136, %p137
      %p139 = scmp.ne.s32.totalorder %s128, %s131
      %p140 = scmp.eq.s32.totalorder %s19, 1
      %p141 = por %p139, %p140
      %p142 = scmp.ne.s32.totalorder %s131, %s132
      %p143 = scmp.eq.s32.totalorder %s19, 0
      %p144 = por %p142, %p143
      %p145 = scmp.ne.s32.totalorder %s131, %s132
      %p146 = scmp.eq.s32.totalorder %s20, 1
      %p147 = por %p145, %p146
      %p149 = scmp.ne.s32.totalorder %s132, %s148
      %p150 = scmp.eq.s32.totalorder %s20, 0
      %p151 = por %p149, %p150
      %p152 = scmp.le.s32.totalorder 1, %s14
      %p153 = scmp.lt.s32.totalorder %s14, 3
      %p154 = pnand %p152, %p153
      %p155 = pneg %p154
      // Predicated region
      $region9: #{_weighted_loss.1} parent=5 // pred_check
        _
      $region10: #{_weighted_loss.1} parent=5 // pred_check_branch
        %157 = sbr.rel (%p154) target = $region12
      $region11: #{_weighted_loss.1} parent=5 // pred_region
        %s158 = ssub.s32 %s14, 1
      $region12: #{_weighted_loss.1} parent=5 // pred_fallthru
        _
      %p159 = scmp.lt.s32.totalorder %s14, 2
      // Predicated region
      $region13: #{_weighted_loss.1} parent=5 // pred_check
        %p160 = pneg %p159
      $region14: #{_weighted_loss.1} parent=5 // pred_check_branch
        %162 = sbr.rel (%p160) target = $region16
      $region15: #{_weighted_loss.1} parent=5 // pred_region
        // Predicated region
        $region17: #{_weighted_loss.1} parent=15 // pred_check
          %p163 = pneg %p34
        $region18: #{_weighted_loss.1} parent=15 // pred_check_branch
          %165 = sbr.rel (%p163) target = $region20
        $region19: #{_weighted_loss.1} parent=15 // pred_region
          %s166 = sand.u32 %s24, 1
          %s167 = scalar_lea.sflag [#allocation3], %s166
          %s168 = sand.u32 %s24, 1
          %s169 = smul.addr %s168, 64
          %s170 = scalar_lea.vmem [#allocation2], %s169
          %s171 = smul.u32 4, %s14
          %s173 = ssub.s32 1024, 1024
          %174 = vsyncadd %s167, %s173
          %s175 = smul.addr %s171, 2
          %s176 = smul.addr %s175, 128
          %s177 = scalar_lea.hbm %s0, %s176
          %s178 = sshll.u32 %s170, 4
          %s179 = int_to_ptr.vmem [resolvable:$true] %s178
          %184 = dma.hbm_to_vmem [thread:$0]  %s177, 1024, %s179, %s167, 256, 256, 16
        $region20: #{_weighted_loss.1} parent=15 // pred_fallthru
          _
        // Predicated region
        $region21: #{_weighted_loss.1} parent=15 // pred_check
          %p185 = pneg %p60
        $region22: #{_weighted_loss.1} parent=15 // pred_check_branch
          %187 = sbr.rel (%p185) target = $region24
        $region23: #{_weighted_loss.1} parent=15 // pred_region
          %p188 = scmp.lt.s32.totalorder %s14, 1
          %s189 = scalar_select %p188, %s14, 1
          %s190 = smul.addr %s189, 2
          %s191 = smul.addr %s190, 8
          %s192 = scalar_lea.vmem %s1, %s191
        $region24: #{_weighted_loss.1} parent=15 // pred_fallthru
          _
        // Predicated region
        $region25: #{_weighted_loss.1} parent=15 // pred_check
          %p193 = pneg %p86
        $region26: #{_weighted_loss.1} parent=15 // pred_check_branch
          %195 = sbr.rel (%p193) target = $region28
        $region27: #{_weighted_loss.1} parent=15 // pred_region
          %s196 = smul.u32 4, %s14
          %p197 = scmp.lt.s32.totalorder %s196, 7
          %s198 = scalar_select %p197, %s196, 7
          %s199 = smul.addr %s198, 8
          %s200 = scalar_lea.vmem %s2, %s199
          %s201 = smul.u32 4, %s14
        $region28: #{_weighted_loss.1} parent=15 // pred_fallthru
          _
      $region16: #{_weighted_loss.1} parent=5 // pred_fallthru
        _
      %p202 = scmp.le.s32.totalorder 1, %s14
      %p203 = scmp.lt.s32.totalorder %s14, 3
      %p204 = pnand %p202, %p203
      %p205 = pneg %p204
      // Predicated region
      $region29: #{_weighted_loss.1} parent=5 // pred_check
        _
      $region30: #{_weighted_loss.1} parent=5 // pred_check_branch
        %207 = sbr.rel (%p204) target = $region32
      $region31: #{_weighted_loss.1} parent=5 // pred_region
        %s208 = ssub.s32 %s14, 1
        %s209 = sand.u32 %s27, 1
        %s210 = scalar_lea.sflag [#allocation3], %s209
        %s211 = sand.u32 %s27, 1
        %s212 = smul.addr %s211, 64
        %s213 = scalar_lea.vmem [#allocation2], %s212
        // Predicated region
        $region33: #{_weighted_loss.1} parent=31 // pred_check
          %p214 = pneg %p40
        $region34: #{_weighted_loss.1} parent=31 // pred_check_branch
          %216 = sbr.rel (%p214) target = $region36
        $region35: #{_weighted_loss.1} parent=31 // pred_region
          %217 = dma.done %s210, 1024
        $region36: #{_weighted_loss.1} parent=31 // pred_fallthru
          _
        %s218 = sand.u32 %s27, 1
        %s219 = scalar_lea.sflag [#allocation3], %s218
        %s220 = sand.u32 %s27, 1
        %s221 = smul.addr %s220, 64
        %s222 = scalar_lea.vmem [#allocation2], %s221
        %p223 = pneg %p40
        %p224 = pneg %p37
        %p225 = scmp.lt.s32.totalorder %s19, 1
        %s226 = scalar_select %p225, %s19, 1
        %s227 = smul.addr %s226, 2
        %s228 = smul.addr %s227, 8
        %s229 = scalar_lea.vmem %s1, %s228
        %p230 = pneg %p66
        %p231 = pneg %p63
        %s232 = smul.u32 4, %s19
        %p233 = scmp.lt.s32.totalorder %s232, 7
        %s234 = scalar_select %p233, %s232, 7
        %s235 = smul.addr %s234, 8
        %s236 = scalar_lea.vmem %s2, %s235
        %p237 = pneg %p92
        %p238 = pneg %p89
        %p239 = pneg %p118
        %p240 = pneg %p115
        %p241 = scmp.lt.s32.totalorder %s19, 1
        %s242 = scalar_select %p241, %s19, 1
        %s243 = scalar_lea.vmem %s3, %s242
        %p244 = pneg %p144
        %p245 = pneg %p141
        %p246 = scmp.lt.s32.totalorder %s19, 1
        %s247 = scalar_select %p246, %s19, 1
        %s248 = scalar_lea.vmem %s4, %s247
        %s249 = smul.u32 4, %s19
        %p250 = scmp.lt.s32.totalorder %s19, 1
        %s251 = scalar_select %p250, %s19, 1
        %s252 = smul.addr %s251, 2
        %s253 = smul.addr %s252, 8
        %s254 = scalar_lea.vmem %s1, %s253
        %s255 = smul.u32 4, %s19
        %p256 = scmp.lt.s32.totalorder %s255, 7
        %s257 = scalar_select %p256, %s255, 7
        %s258 = smul.addr %s257, 8
        %s259 = scalar_lea.vmem %s2, %s258
        %s260 = smul.u32 4, %s19
        %p261 = scmp.lt.s32.totalorder %s19, 1
        %s262 = scalar_select %p261, %s19, 1
        %s263 = scalar_lea.vmem %s3, %s262
        %p264 = scmp.lt.s32.totalorder %s19, 1
        %s265 = scalar_select %p264, %s19, 1
        %s266 = scalar_lea.vmem %s4, %s265
        %v267 = vld [vmem:[%s213] sm:$0xff]
        %v268 = vld [vmem:[%s213 + $0x8] sm:$0xff]
        %v269 = vld [vmem:[%s213 + $0x10] sm:$0xff]
        %v270 = vld [vmem:[%s213 + $0x18] sm:$0xff]
        %v271 = vld [vmem:[%s213 + $0x20] sm:$0xff]
        %v272 = vld [vmem:[%s213 + $0x28] sm:$0xff]
        %v273 = vld [vmem:[%s213 + $0x30] sm:$0xff]
        %v274 = vld [vmem:[%s213 + $0x38] sm:$0xff]
        %v275 = vld [vmem:[%s254] sm:$0xff]
        %v276 = vld [vmem:[%s254 + $0x8] sm:$0xff]
        %v277 = vunpack.c.0.s8 %v275
        %v278 = vunpack.c.0.s8 %v276
        %v279 = vunpack.c.1.s8 %v275
        %v280 = vunpack.c.1.s8 %v276
        %v281 = vunpack.c.2.s8 %v275
        %v282 = vunpack.c.2.s8 %v276
        %v283 = vunpack.c.3.s8 %v275
        %v284 = vunpack.c.3.s8 %v276
        %v285 = vcvt.s32.f32 %v277
        %v286 = vcvt.s32.f32 %v278
        %v287 = vcvt.s32.f32 %v279
        %v288 = vcvt.s32.f32 %v280
        %v289 = vcvt.s32.f32 %v281
        %v290 = vcvt.s32.f32 %v282
        %v291 = vcvt.s32.f32 %v283
        %v292 = vcvt.s32.f32 %v284
        %v293 = vmul.f32 %v285, -1e+09
        %v294 = vmul.f32 %v286, -1e+09
        %v295 = vmul.f32 %v287, -1e+09
        %v296 = vmul.f32 %v288, -1e+09
        %v297 = vmul.f32 %v289, -1e+09
        %v298 = vmul.f32 %v290, -1e+09
        %v299 = vmul.f32 %v291, -1e+09
        %v300 = vmul.f32 %v292, -1e+09
        %v301 = vadd.f32 %v293, %v267
        %v302 = vadd.f32 %v294, %v268
        %v303 = vadd.f32 %v295, %v269
        %v304 = vadd.f32 %v296, %v270
        %v305 = vadd.f32 %v297, %v271
        %v306 = vadd.f32 %v298, %v272
        %v307 = vadd.f32 %v299, %v273
        %v308 = vadd.f32 %v300, %v274
        %v309 = vld [vmem:[%s259] sm:$0xff]
        %v310 = vld [vmem:[%s259 + $0x8] sm:$0xff]
        %v311 = vld [vmem:[%s259 + $0x10] sm:$0xff]
        %v312 = vld [vmem:[%s259 + $0x18] sm:$0xff]
        %v313 = vmax.f32 %v301, %v302
        %314 = vmax.xlane.f32.xlu0 %v313
        %v315 = vpop.xlane.xlu0 %314
        %v316 = vmax.f32 %v303, %v304
        %317 = vmax.xlane.f32.xlu0 %v316
        %v318 = vpop.xlane.xlu0 %317
        %v319 = vmax.f32 %v305, %v306
        %320 = vmax.xlane.f32.xlu0 %v319
        %v321 = vpop.xlane.xlu0 %320
        %v322 = vmax.f32 %v307, %v308
        %323 = vmax.xlane.f32.xlu0 %v322
        %v324 = vpop.xlane.xlu0 %323
        %v325 = vsub.f32 %v301, %v315
        %v326 = vsub.f32 %v302, %v315
        %v327 = vsub.f32 %v303, %v318
        %v328 = vsub.f32 %v304, %v318
        %v329 = vsub.f32 %v305, %v321
        %v330 = vsub.f32 %v306, %v321
        %v331 = vsub.f32 %v307, %v324
        %v332 = vsub.f32 %v308, %v324
        %v333 = vmul.f32 %v325, 1.442695
        %v334 = vpow.pop %v333
        %v335 = vmul.f32 %v326, 1.442695
        %v336 = vpow.pop %v335
        %v337 = vmul.f32 %v327, 1.442695
        %v338 = vpow.pop %v337
        %v339 = vmul.f32 %v328, 1.442695
        %v340 = vpow.pop %v339
        %v341 = vmul.f32 %v329, 1.442695
        %v342 = vpow.pop %v341
        %v343 = vmul.f32 %v330, 1.442695
        %v344 = vpow.pop %v343
        %v345 = vmul.f32 %v331, 1.442695
        %v346 = vpow.pop %v345
        %v347 = vmul.f32 %v332, 1.442695
        %v348 = vpow.pop %v347
        %v349 = vadd.f32 %v334, %v336
        %350 = vadd.xlane.f32.xlu0 %v349
        %v351 = vpop.xlane.xlu0 %350
        %v352 = vadd.f32 %v338, %v340
        %353 = vadd.xlane.f32.xlu0 %v352
        %v354 = vpop.xlane.xlu0 %353
        %v355 = vadd.f32 %v342, %v344
        %356 = vadd.xlane.f32.xlu0 %v355
        %v357 = vpop.xlane.xlu0 %356
        %v358 = vadd.f32 %v346, %v348
        %359 = vadd.xlane.f32.xlu0 %v358
        %v360 = vpop.xlane.xlu0 %359
        %v361 = vlog2.pop %v351
        %v362 = vmul.f32 %v361, 0.6931472
        %v363 = vlog2.pop %v354
        %v364 = vmul.f32 %v363, 0.6931472
        %v365 = vlog2.pop %v357
        %v366 = vmul.f32 %v365, 0.6931472
        %v367 = vlog2.pop %v360
        %v368 = vmul.f32 %v367, 0.6931472
        %v369 = vlaneseq
        %v370 = vand.u32 %v369, 127
        %v371 = vadd.s32 %v370, 128
        %372 = vset.pattern.permute.xlu0 0
        %373 = vperm.xlu0 %372, %v309
        %v374 = vpop.permute.xlu0 %373
        %375 = vset.pattern.permute.xlu0 0
        %376 = vperm.xlu0 %375, %v310
        %v377 = vpop.permute.xlu0 %376
        %378 = vset.pattern.permute.xlu0 0
        %379 = vperm.xlu0 %378, %v311
        %v380 = vpop.permute.xlu0 %379
        %381 = vset.pattern.permute.xlu0 0
        %382 = vperm.xlu0 %381, %v312
        %v383 = vpop.permute.xlu0 %382
        %vm384 = vcmp.eq.s32.totalorder %v370, %v374
        %vm385 = vcmp.eq.s32.totalorder %v371, %v374
        %vm386 = vcmp.eq.s32.totalorder %v370, %v377
        %vm387 = vcmp.eq.s32.totalorder %v371, %v377
        %vm388 = vcmp.eq.s32.totalorder %v370, %v380
        %vm389 = vcmp.eq.s32.totalorder %v371, %v380
        %vm390 = vcmp.eq.s32.totalorder %v370, %v383
        %vm391 = vcmp.eq.s32.totalorder %v371, %v383
        %v392 = vsel %vm384, %v325, 0.0
        %v393 = vsel %vm385, %v326, 0.0
        %v394 = vsel %vm386, %v327, 0.0
        %v395 = vsel %vm387, %v328, 0.0
        %v396 = vsel %vm388, %v329, 0.0
        %v397 = vsel %vm389, %v330, 0.0
        %v398 = vsel %vm390, %v331, 0.0
        %v399 = vsel %vm391, %v332, 0.0
        %v400 = vadd.f32 %v392, %v393
        %401 = vadd.xlane.f32.xlu0 %v400
        %v402 = vpop.xlane.xlu0 %401
        %v403 = vadd.f32 %v394, %v395
        %404 = vadd.xlane.f32.xlu0 %v403
        %v405 = vpop.xlane.xlu0 %404
        %v406 = vadd.f32 %v396, %v397
        %407 = vadd.xlane.f32.xlu0 %v406
        %v408 = vpop.xlane.xlu0 %407
        %v409 = vadd.f32 %v398, %v399
        %410 = vadd.xlane.f32.xlu0 %v409
        %v411 = vpop.xlane.xlu0 %410
        %v412 = vsub.f32 %v362, %v402
        %v413 = vsub.f32 %v364, %v405
        %v414 = vsub.f32 %v366, %v408
        %v415 = vsub.f32 %v368, %v411
        %v416 = vadd.f32 %v412, %v413
        %v417 = vadd.f32 %v416, %v414
        %v418 = vadd.f32 %v417, %v415
        %v419 = vrot.slane %v418, 4
        %v420 = vadd.f32 %v418, %v419
        %v421 = vrot.slane %v420, 2
        %v422 = vadd.f32 %v420, %v421
        %v423 = vrot.slane %v422, 1
        %v424 = vadd.f32 %v422, %v423
        %425 = vst [vmem:[%s263] sm:$0x1] %v424
        %v426 = vadd.f32 %v402, %v315
        %v427 = vadd.f32 %v405, %v318
        %v428 = vadd.f32 %v408, %v321
        %v429 = vadd.f32 %v411, %v324
        %v430 = vsub.f32 %v301, %v426
        %v431 = vsub.f32 %v302, %v426
        %v432 = vsub.f32 %v303, %v427
        %v433 = vsub.f32 %v304, %v427
        %v434 = vsub.f32 %v305, %v428
        %v435 = vsub.f32 %v306, %v428
        %v436 = vsub.f32 %v307, %v429
        %v437 = vsub.f32 %v308, %v429
        %v438 = vadd.f32 %v430, 1.0
        %v439 = vadd.f32 %v431, 1.0
        %v440 = vadd.f32 %v432, 1.0
        %v441 = vadd.f32 %v433, 1.0
        %v442 = vadd.f32 %v434, 1.0
        %v443 = vadd.f32 %v435, 1.0
        %v444 = vadd.f32 %v436, 1.0
        %v445 = vadd.f32 %v437, 1.0
        %v446 = vmax.f32 %v438, 0.0
        %v447 = vmax.f32 %v439, 0.0
        %v448 = vmax.f32 %v440, 0.0
        %v449 = vmax.f32 %v441, 0.0
        %v450 = vmax.f32 %v442, 0.0
        %v451 = vmax.f32 %v443, 0.0
        %v452 = vmax.f32 %v444, 0.0
        %v453 = vmax.f32 %v445, 0.0
        %v454 = vmax.f32 %v446, %v447
        %455 = vmax.xlane.f32.xlu0 %v454
        %v456 = vpop.xlane.xlu0 %455
        %v457 = vmax.f32 %v448, %v449
        %458 = vmax.xlane.f32.xlu0 %v457
        %v459 = vpop.xlane.xlu0 %458
        %v460 = vmax.f32 %v450, %v451
        %461 = vmax.xlane.f32.xlu0 %v460
        %v462 = vpop.xlane.xlu0 %461
        %v463 = vmax.f32 %v452, %v453
        %464 = vmax.xlane.f32.xlu0 %v463
        %v465 = vpop.xlane.xlu0 %464
        %v466 = vsub.f32 %v446, %v456
        %v467 = vsub.f32 %v447, %v456
        %v468 = vsub.f32 %v448, %v459
        %v469 = vsub.f32 %v449, %v459
        %v470 = vsub.f32 %v450, %v462
        %v471 = vsub.f32 %v451, %v462
        %v472 = vsub.f32 %v452, %v465
        %v473 = vsub.f32 %v453, %v465
        %v474 = vmul.f32 %v466, 1.442695
        %v475 = vpow.pop %v474
        %v476 = vmul.f32 %v467, 1.442695
        %v477 = vpow.pop %v476
        %v478 = vmul.f32 %v468, 1.442695
        %v479 = vpow.pop %v478
        %v480 = vmul.f32 %v469, 1.442695
        %v481 = vpow.pop %v480
        %v482 = vmul.f32 %v470, 1.442695
        %v483 = vpow.pop %v482
        %v484 = vmul.f32 %v471, 1.442695
        %v485 = vpow.pop %v484
        %v486 = vmul.f32 %v472, 1.442695
        %v487 = vpow.pop %v486
        %v488 = vmul.f32 %v473, 1.442695
        %v489 = vpow.pop %v488
        %vm490 = vcmp.ne.f32.partialorder %v446, 0.0
        %vm491 = vcmp.ne.f32.partialorder %v447, 0.0
        %vm492 = vcmp.ne.f32.partialorder %v448, 0.0
        %vm493 = vcmp.ne.f32.partialorder %v449, 0.0
        %vm494 = vcmp.ne.f32.partialorder %v450, 0.0
        %vm495 = vcmp.ne.f32.partialorder %v451, 0.0
        %vm496 = vcmp.ne.f32.partialorder %v452, 0.0
        %vm497 = vcmp.ne.f32.partialorder %v453, 0.0
        %v498 = vsel %vm490, 1, 0
        %v499 = vsel %vm491, 1, 0
        %v500 = vsel %vm492, 1, 0
        %v501 = vsel %vm493, 1, 0
        %v502 = vsel %vm494, 1, 0
        %v503 = vsel %vm495, 1, 0
        %v504 = vsel %vm496, 1, 0
        %v505 = vsel %vm497, 1, 0
        %v506 = vcvt.s32.f32 %v498
        %v507 = vcvt.s32.f32 %v499
        %v508 = vcvt.s32.f32 %v500
        %v509 = vcvt.s32.f32 %v501
        %v510 = vcvt.s32.f32 %v502
        %v511 = vcvt.s32.f32 %v503
        %v512 = vcvt.s32.f32 %v504
        %v513 = vcvt.s32.f32 %v505
        %v514 = vmul.f32 %v475, %v506
        %v515 = vmul.f32 %v477, %v507
        %v516 = vmul.f32 %v479, %v508
        %v517 = vmul.f32 %v481, %v509
        %v518 = vmul.f32 %v483, %v510
        %v519 = vmul.f32 %v485, %v511
        %v520 = vmul.f32 %v487, %v512
        %v521 = vmul.f32 %v489, %v513
        %v522 = vadd.f32 %v514, %v515
        %523 = vadd.xlane.f32.xlu0 %v522
        %v524 = vpop.xlane.xlu0 %523
        %v525 = vadd.f32 %v516, %v517
        %526 = vadd.xlane.f32.xlu0 %v525
        %v527 = vpop.xlane.xlu0 %526
        %v528 = vadd.f32 %v518, %v519
        %529 = vadd.xlane.f32.xlu0 %v528
        %v530 = vpop.xlane.xlu0 %529
        %v531 = vadd.f32 %v520, %v521
        %532 = vadd.xlane.f32.xlu0 %v531
        %v533 = vpop.xlane.xlu0 %532
        %vm534 = vcmp.eq.f32.partialorder %v524, 0.0
        %vm535 = vcmp.eq.f32.partialorder %v527, 0.0
        %vm536 = vcmp.eq.f32.partialorder %v530, 0.0
        %vm537 = vcmp.eq.f32.partialorder %v533, 0.0
        %v538 = vsel %vm534, 1, 0
        %v539 = vsel %vm535, 1, 0
        %v540 = vsel %vm536, 1, 0
        %v541 = vsel %vm537, 1, 0
        %v542 = vcvt.s32.f32 %v538
        %v543 = vcvt.s32.f32 %v539
        %v544 = vcvt.s32.f32 %v540
        %v545 = vcvt.s32.f32 %v541
        %v546 = vadd.f32 %v524, %v542
        %v547 = vadd.f32 %v527, %v543
        %v548 = vadd.f32 %v530, %v544
        %v549 = vadd.f32 %v533, %v545
        %v550 = vrcp.pop %v546
        %v551 = vmul.f32 1.0, %v550
        %v552 = vrcp.pop %v547
        %v553 = vmul.f32 1.0, %v552
        %v554 = vrcp.pop %v548
        %v555 = vmul.f32 1.0, %v554
        %v556 = vrcp.pop %v549
        %v557 = vmul.f32 1.0, %v556
        %v558 = vmul.f32 %v514, %v551
        %v559 = vmul.f32 %v515, %v551
        %v560 = vmul.f32 %v516, %v553
        %v561 = vmul.f32 %v517, %v553
        %v562 = vmul.f32 %v518, %v555
        %v563 = vmul.f32 %v519, %v555
        %v564 = vmul.f32 %v520, %v557
        %v565 = vmul.f32 %v521, %v557
        %v566 = vsub.f32 0.0, %v301
        %v567 = vsub.f32 0.0, %v302
        %v568 = vsub.f32 0.0, %v303
        %v569 = vsub.f32 0.0, %v304
        %v570 = vsub.f32 0.0, %v305
        %v571 = vsub.f32 0.0, %v306
        %v572 = vsub.f32 0.0, %v307
        %v573 = vsub.f32 0.0, %v308
        %v574 = vsub.f32 %v566, %v426
        %v575 = vsub.f32 %v567, %v426
        %v576 = vsub.f32 %v568, %v427
        %v577 = vsub.f32 %v569, %v427
        %v578 = vsub.f32 %v570, %v428
        %v579 = vsub.f32 %v571, %v428
        %v580 = vsub.f32 %v572, %v429
        %v581 = vsub.f32 %v573, %v429
        %v582 = vsub.f32 %v574, 2.0
        %v583 = vsub.f32 %v575, 2.0
        %v584 = vsub.f32 %v576, 2.0
        %v585 = vsub.f32 %v577, 2.0
        %v586 = vsub.f32 %v578, 2.0
        %v587 = vsub.f32 %v579, 2.0
        %v588 = vsub.f32 %v580, 2.0
        %v589 = vsub.f32 %v581, 2.0
        %v590 = vmin.f32 %v582, 0.0
        %v591 = vmin.f32 %v583, 0.0
        %v592 = vmin.f32 %v584, 0.0
        %v593 = vmin.f32 %v585, 0.0
        %v594 = vmin.f32 %v586, 0.0
        %v595 = vmin.f32 %v587, 0.0
        %v596 = vmin.f32 %v588, 0.0
        %v597 = vmin.f32 %v589, 0.0
        %v598 = vand.u32 2147483647, %v582
        %v599 = vand.u32 2147483647, %v583
        %v600 = vand.u32 2147483647, %v584
        %v601 = vand.u32 2147483647, %v585
        %v602 = vand.u32 2147483647, %v586
        %v603 = vand.u32 2147483647, %v587
        %v604 = vand.u32 2147483647, %v588
        %v605 = vand.u32 2147483647, %v589
        %v606 = vsub.f32 0.0, %v598
        %v607 = vsub.f32 0.0, %v599
        %v608 = vsub.f32 0.0, %v600
        %v609 = vsub.f32 0.0, %v601
        %v610 = vsub.f32 0.0, %v602
        %v611 = vsub.f32 0.0, %v603
        %v612 = vsub.f32 0.0, %v604
        %v613 = vsub.f32 0.0, %v605
        %v614 = vmul.f32 %v606, 1.442695
        %v615 = vpow.pop %v614
        %v616 = vmul.f32 %v607, 1.442695
        %v617 = vpow.pop %v616
        %v618 = vmul.f32 %v608, 1.442695
        %v619 = vpow.pop %v618
        %v620 = vmul.f32 %v609, 1.442695
        %v621 = vpow.pop %v620
        %v622 = vmul.f32 %v610, 1.442695
        %v623 = vpow.pop %v622
        %v624 = vmul.f32 %v611, 1.442695
        %v625 = vpow.pop %v624
        %v626 = vmul.f32 %v612, 1.442695
        %v627 = vpow.pop %v626
        %v628 = vmul.f32 %v613, 1.442695
        %v629 = vpow.pop %v628
        %v630 = vadd.f32 %v615, 1.0
        %v631 = vadd.f32 %v617, 1.0
        %v632 = vadd.f32 %v619, 1.0
        %v633 = vadd.f32 %v621, 1.0
        %v634 = vadd.f32 %v623, 1.0
        %v635 = vadd.f32 %v625, 1.0
        %v636 = vadd.f32 %v627, 1.0
        %v637 = vadd.f32 %v629, 1.0
        %v638 = vlog2.pop %v630
        %v639 = vmul.f32 %v638, 0.6931472
        %v640 = vlog2.pop %v631
        %v641 = vmul.f32 %v640, 0.6931472
        %v642 = vlog2.pop %v632
        %v643 = vmul.f32 %v642, 0.6931472
        %v644 = vlog2.pop %v633
        %v645 = vmul.f32 %v644, 0.6931472
        %v646 = vlog2.pop %v634
        %v647 = vmul.f32 %v646, 0.6931472
        %v648 = vlog2.pop %v635
        %v649 = vmul.f32 %v648, 0.6931472
        %v650 = vlog2.pop %v636
        %v651 = vmul.f32 %v650, 0.6931472
        %v652 = vlog2.pop %v637
        %v653 = vmul.f32 %v652, 0.6931472
        %v654 = vsub.f32 %v590, %v639
        %v655 = vsub.f32 %v591, %v641
        %v656 = vsub.f32 %v592, %v643
        %v657 = vsub.f32 %v593, %v645
        %v658 = vsub.f32 %v594, %v647
        %v659 = vsub.f32 %v595, %v649
        %v660 = vsub.f32 %v596, %v651
        %v661 = vsub.f32 %v597, %v653
        %v662 = vmul.f32 %v558, %v654
        %v663 = vmul.f32 %v559, %v655
        %v664 = vmul.f32 %v560, %v656
        %v665 = vmul.f32 %v561, %v657
        %v666 = vmul.f32 %v562, %v658
        %v667 = vmul.f32 %v563, %v659
        %v668 = vmul.f32 %v564, %v660
        %v669 = vmul.f32 %v565, %v661
        %v670 = vadd.f32 %v662, %v663
        %671 = vadd.xlane.f32.xlu0 %v670
        %v672 = vpop.xlane.xlu0 %671
        %v673 = vadd.f32 %v664, %v665
        %674 = vadd.xlane.f32.xlu0 %v673
        %v675 = vpop.xlane.xlu0 %674
        %v676 = vadd.f32 %v666, %v667
        %677 = vadd.xlane.f32.xlu0 %v676
        %v678 = vpop.xlane.xlu0 %677
        %v679 = vadd.f32 %v668, %v669
        %680 = vadd.xlane.f32.xlu0 %v679
        %v681 = vpop.xlane.xlu0 %680
        %v682 = vadd.f32 %v672, %v675
        %v683 = vadd.f32 %v682, %v678
        %v684 = vadd.f32 %v683, %v681
        %v685 = vrot.slane %v684, 4
        %v686 = vadd.f32 %v684, %v685
        %v687 = vrot.slane %v686, 2
        %v688 = vadd.f32 %v686, %v687
        %v689 = vrot.slane %v688, 1
        %v690 = vadd.f32 %v688, %v689
        %691 = vst [vmem:[%s266] sm:$0x1] %v690
        %p692 = scmp.lt.s32.totalorder %s19, 1
        %s693 = scalar_select %p692, %s19, 1
        %s694 = scalar_lea.vmem %s3, %s693
        %p695 = scmp.lt.s32.totalorder %s19, 1
        %s696 = scalar_select %p695, %s19, 1
        %s697 = scalar_lea.vmem %s4, %s696
        // Predicated region
        $region37: #{_weighted_loss.1} parent=31 // pred_check
          %p698 = pneg %p115
        $region38: #{_weighted_loss.1} parent=31 // pred_check_branch
          %700 = sbr.rel (%p698) target = $region40
        $region39: #{_weighted_loss.1} parent=31 // pred_region
          _
        $region40: #{_weighted_loss.1} parent=31 // pred_fallthru
          _
        // Predicated region
        $region41: #{_weighted_loss.1} parent=31 // pred_check
          %p701 = pneg %p141
        $region42: #{_weighted_loss.1} parent=31 // pred_check_branch
          %703 = sbr.rel (%p701) target = $region44
        $region43: #{_weighted_loss.1} parent=31 // pred_region
          _
        $region44: #{_weighted_loss.1} parent=31 // pred_fallthru
          _
      $region32: #{_weighted_loss.1} parent=5 // pred_fallthru
        _
      %p704 = scmp.le.s32.totalorder 2, %s14
      // Predicated region
      $region45: #{_weighted_loss.1} parent=5 // pred_check
        %p705 = pneg %p704
      $region46: #{_weighted_loss.1} parent=5 // pred_check_branch
        %707 = sbr.rel (%p705) target = $region48
      $region47: #{_weighted_loss.1} parent=5 // pred_region
        %s708 = ssub.s32 %s14, 2
        // Predicated region
        $region49: #{_weighted_loss.1} parent=47 // pred_check
          %p709 = pneg %p121
        $region50: #{_weighted_loss.1} parent=47 // pred_check_branch
          %711 = sbr.rel (%p709) target = $region52
        $region51: #{_weighted_loss.1} parent=47 // pred_region
          %p712 = scmp.lt.s32.totalorder %s20, 1
          %s713 = scalar_select %p712, %s20, 1
          %s714 = scalar_lea.vmem %s3, %s713
        $region52: #{_weighted_loss.1} parent=47 // pred_fallthru
          _
        // Predicated region
        $region53: #{_weighted_loss.1} parent=47 // pred_check
          %p715 = pneg %p147
        $region54: #{_weighted_loss.1} parent=47 // pred_check_branch
          %717 = sbr.rel (%p715) target = $region56
        $region55: #{_weighted_loss.1} parent=47 // pred_region
          %p718 = scmp.lt.s32.totalorder %s20, 1
          %s719 = scalar_select %p718, %s20, 1
          %s720 = scalar_lea.vmem %s4, %s719
        $region56: #{_weighted_loss.1} parent=47 // pred_fallthru
          _
      $region48: #{_weighted_loss.1} parent=5 // pred_fallthru
        _
    $region6: #{_weighted_loss.1} parent=1 // loop_footer
      %s18 = sadd.s32 1, %s14
    $region7: #{_weighted_loss.1} parent=1 // loop_footer_branch
      %13 = sbr.rel target = $region3
    $region8: #{_weighted_loss.1} parent=1 // loop_exit
      _
    %721 = vsyncpa [#allocation3], 1
    %s722 = scalar_lea.sflag [#allocation3], 1
    %723 = vsyncpa %s722, 1

</llo_original>
